<compile_context>
chip_gen: v5e
topology: v5e:2x2
jax: 0.10.0
libtpu: 0.0.40
codegen_flags: <defaults>
</compile_context>

<pallas_src>
from functools import partial

import jax
import jax.numpy as jnp
from jax.experimental import pallas as pl
from jax.experimental.pallas import tpu as pltpu

_MIB = 1024 * 1024
_NEG_BIG = -1e30  # finite "minus infinity" for masked (padded) keys


def _round_up(x, m):
    return ((x + m - 1) // m) * m


def _plan_tiles(n, *, flash_tile=512, token_tile=256):
    """Returns (n_pad, flash_tile, token_tile), all multiples of 8, tiles divide n_pad."""
    assert flash_tile % token_tile == 0 and token_tile % 8 == 0
    n8 = _round_up(n, 8)
    if n8 <= flash_tile:
        return n8, n8, n8                      # single tile; pad only to sublane multiple
    return _round_up(n, flash_tile), flash_tile, token_tile


def _compiler_params(dimension_semantics, est_bytes):
    # >= 32 MiB (lift v5e's 16 MiB default scoped limit), <= 48 MiB (leave
    # headroom within v7x's 64 MiB physical VMEM for Mosaic internal scratch).
    vmem_limit = int(min(48 * _MIB, max(32 * _MIB, est_bytes)))
    return pltpu.CompilerParams(
        dimension_semantics=dimension_semantics,
        vmem_limit_bytes=vmem_limit,
    )


# ---------------------- qkv projection + fused head split ----------------------

def _qkv_split_kernel(x_ref, w_ref, q_ref, k_ref, v_ref, *, num_heads, head_dim):
    # One full-width MXU matmul (contraction C, output width 3C), f32 accumulate.
    y = jnp.dot(x_ref[0], w_ref[...],
                preferred_element_type=jnp.float32).astype(q_ref.dtype)  # (TM, 3C)
    outs = (q_ref, k_ref, v_ref)
    # Static lane slices -> per-head (TM, D) tiles written straight into the
    # (B, H, N, D) outputs; no wrapper transpose, no extra HBM pass over qkv.
    for kk in range(3):
        for h in range(num_heads):
            col = (kk * num_heads + h) * head_dim
            outs[kk][0, h] = y[:, col:col + head_dim]


def _qkv_projection(x, w_qkv, *, num_heads, head_dim, tile_m):
    B, N, C = x.shape
    P = w_qkv.shape[1]
    H, D = num_heads, head_dim
    itemsize = jnp.dtype(x.dtype).itemsize
    est = (2 * tile_m * C * itemsize            # x blocks (double-buffered)
           + 2 * C * P * itemsize               # resident weight allocation
           + 2 * 3 * tile_m * C * itemsize      # q/k/v output blocks
           + tile_m * P * 4                     # f32 matmul temporary
           + 8 * _MIB)                          # Mosaic headroom
    out_sds = jax.ShapeDtypeStruct((B, H, N, D), x.dtype)
    return pl.pallas_call(
        partial(_qkv_split_kernel, num_heads=H, head_dim=D),
        out_shape=(out_sds, out_sds, out_sds),
        grid_spec=pltpu.PrefetchScalarGridSpec(
            num_scalar_prefetch=0,
            grid=(B, N // tile_m),
            in_specs=[
                pl.BlockSpec((1, tile_m, C), lambda b, t: (b, t, 0)),
                pl.BlockSpec((C, P), lambda b, t: (0, 0)),     # resident weight
            ],
            out_specs=(
                pl.BlockSpec((1, H, tile_m, D), lambda b, t: (b, 0, t, 0)),
                pl.BlockSpec((1, H, tile_m, D), lambda b, t: (b, 0, t, 0)),
                pl.BlockSpec((1, H, tile_m, D), lambda b, t: (b, 0, t, 0)),
            ),
        ),
        compiler_params=_compiler_params(("parallel", "parallel"), est),
    )(x, w_qkv)


# ------------------------------ flash attention --------------------------------

def _flash_kernel(q_ref, k_ref, v_ref, o_ref, m_sc, l_sc, acc_sc, *,
                  n_real, tile_k, p_in_bf16):
    ki = pl.program_id(3)

    @pl.when(ki == 0)
    def _init():
        m_sc[...] = jnp.full(m_sc.shape, -jnp.inf, dtype=m_sc.dtype)
        l_sc[...] = jnp.zeros(l_sc.shape, dtype=l_sc.dtype)
        acc_sc[...] = jnp.zeros(acc_sc.shape, dtype=acc_sc.dtype)

    q = q_ref[0, 0]                              # (TQ, D), scale already folded into Wq
    k = k_ref[0, 0]                              # (TK, D)
    v = v_ref[0, 0]                              # (TK, D)

    # logits: contract over D on the MXU (no explicit k transpose), f32 accumulate
    s = jax.lax.dot_general(q, k, (((1,), (1,)), ((), ())),
                            preferred_element_type=jnp.float32)   # (TQ, TK)

    if n_real is not None:
        # Padded keys: mask before the online max/sum so they contribute nothing.
        col = jax.lax.broadcasted_iota(jnp.int32, s.shape, 1)
        s = jnp.where(col < (n_real - ki * tile_k), s, _NEG_BIG)

    m_prev = m_sc[...]
    m_new = jnp.maximum(m_prev, jnp.max(s, axis=-1, keepdims=True))
    alpha = jnp.exp(m_prev - m_new)              # EUP
    if p_in_bf16:
        # bf16 EUP/VPU on v6e/v7x: halves the (TQ, TK) p footprint; l stays f32.
        p = jnp.exp((s - m_new).astype(jnp.bfloat16))
        l_part = jnp.sum(p, axis=-1, keepdims=True, dtype=jnp.float32)
        pv = jnp.dot(p, v, preferred_element_type=jnp.float32)
    else:
        p = jnp.exp(s - m_new)
        l_part = jnp.sum(p, axis=-1, keepdims=True)
        pv = jnp.dot(p.astype(v.dtype), v, preferred_element_type=jnp.float32)
    l_sc[...] = alpha * l_sc[...] + l_part
    acc_sc[...] = alpha * acc_sc[...] + pv
    m_sc[...] = m_new

    @pl.when(ki == pl.num_programs(3) - 1)
    def _finalize():
        inv_l = pl.reciprocal(l_sc[...], approx=False)   # exact: runs once per q tile
        o_ref[0, 0] = (acc_sc[...] * inv_l).astype(o_ref.dtype)


def _flash_attention(q, k, v, *, tile_q, tile_k, n_real):
    B, H, N, D = q.shape
    itemsize = jnp.dtype(q.dtype).itemsize
    est = (2 * (2 * tile_q * D + 2 * tile_k * D) * itemsize   # q/o + k/v blocks
           + tile_q * (D + 2) * 4                             # m/l/acc scratch
           + 2 * tile_q * tile_k * 4                          # s / p temporaries
           + 8 * _MIB)
    p_in_bf16 = jnp.dtype(q.dtype) == jnp.dtype(jnp.bfloat16)
    return pl.pallas_call(
        partial(_flash_kernel,
                n_real=None if n_real == N else n_real,
                tile_k=tile_k, p_in_bf16=p_in_bf16),
        out_shape=jax.ShapeDtypeStruct((B, H, N, D), q.dtype),
        grid_spec=pltpu.PrefetchScalarGridSpec(
            num_scalar_prefetch=0,
            # B / H / q-tiles "parallel" (megacore work even at B=1 on v7x);
            # k-tiles "arbitrary" (online-softmax reduction).
            grid=(B, H, N // tile_q, N // tile_k),
            in_specs=[
                pl.BlockSpec((1, 1, tile_q, D), lambda b, h, qi, ki: (b, h, qi, 0)),
                pl.BlockSpec((1, 1, tile_k, D), lambda b, h, qi, ki: (b, h, ki, 0)),
                pl.BlockSpec((1, 1, tile_k, D), lambda b, h, qi, ki: (b, h, ki, 0)),
            ],
            out_specs=pl.BlockSpec((1, 1, tile_q, D),
                                   lambda b, h, qi, ki: (b, h, qi, 0)),
            scratch_shapes=[
                pltpu.VMEM((tile_q, 1), jnp.float32),   # running max  m
                pltpu.VMEM((tile_q, 1), jnp.float32),   # running sum  l
                pltpu.VMEM((tile_q, D), jnp.float32),   # output accumulator
            ],
        ),
        compiler_params=_compiler_params(
            ("parallel", "parallel", "parallel", "arbitrary"), est),
    )(q, k, v)


# -------------------- head merge + output projection (full-width) --------------

def _proj_kernel(o_ref, w_ref, b_ref, out_ref, *, num_heads):
    o = o_ref[0]                                             # (H, TM, D)
    # Merge heads along lanes in VMEM (no HBM transpose), then contract over the
    # full C depth on the MXU.
    xcat = jnp.concatenate([o[h] for h in range(num_heads)], axis=-1)  # (TM, C)
    y = jnp.dot(xcat, w_ref[...], preferred_element_type=jnp.float32)
    out_ref[0] = (y + b_ref[...].astype(jnp.float32)).astype(out_ref.dtype)


def _out_projection(o_heads, w_proj, b_proj, *, tile_m):
    B, H, N, D = o_heads.shape
    C = H * D
    itemsize = jnp.dtype(o_heads.dtype).itemsize
    est = (2 * tile_m * C * itemsize            # o blocks
           + 2 * (C * C + C) * itemsize         # resident weight + bias
           + 2 * tile_m * C * itemsize          # output blocks
           + 2 * tile_m * C * 4                 # concat + f32 matmul temporaries
           + 8 * _MIB)
    return pl.pallas_call(
        partial(_proj_kernel, num_heads=H),
        out_shape=jax.ShapeDtypeStruct((B, N, C), o_heads.dtype),
        grid_spec=pltpu.PrefetchScalarGridSpec(
            num_scalar_prefetch=0,
            grid=(B, N // tile_m),
            in_specs=[
                pl.BlockSpec((1, H, tile_m, D), lambda b, t: (b, 0, t, 0)),
                pl.BlockSpec((C, C), lambda b, t: (0, 0)),    # resident weight
                pl.BlockSpec((1, C), lambda b, t: (0, 0)),    # resident bias
            ],
            out_specs=pl.BlockSpec((1, tile_m, C), lambda b, t: (b, t, 0)),
        ),
        compiler_params=_compiler_params(("parallel", "parallel"), est),
    )(o_heads, w_proj, b_proj)


# ---------------------------------- forward ------------------------------------

def attention_forward(x, w_qkv, w_proj, b_proj, *, num_heads,
                      flash_tile=512, token_tile=256):
    """x: (B, N, C); w_qkv: (C, 3C); w_proj: (C, C); b_proj: (1, C).

    Pass activations/weights in bfloat16 for best throughput on v6e/v7x; kernels
    keep operands in their native dtype and accumulate in f32 on the MXU.
    """
    B, N, C = x.shape
    assert C % num_heads == 0
    D = C // num_heads
    scale = D ** (-0.5)

    n_pad, tile_flash, tile_tok = _plan_tiles(
        N, flash_tile=flash_tile, token_tile=token_tile)

    # Fold the 1/sqrt(D) softmax scale into the Q columns of the qkv weight once
    # (O(C^2), constant-foldable under jit) -> no per-k-tile q*scale multiply.
    w_qkv_scaled = w_qkv.at[:, :C].multiply(scale)

    # Pad tokens if N doesn't tile; padded keys are masked inside the flash
    # kernel, padded query rows are sliced off at the end.
    x_p = x if n_pad == N else jnp.pad(x, ((0, 0), (0, n_pad - N), (0, 0)))

    # 1) qkv projection + head split fused into one kernel     q,k,v: (B, H, Np, D)
    q, k, v = _qkv_projection(x_p, w_qkv_scaled,
                              num_heads=num_heads, head_dim=D, tile_m=tile_tok)

    # 2) flash attention: online softmax over key tiles               (B, H, Np, D)
    o = _flash_attention(q, k, v, tile_q=tile_flash, tile_k=tile_flash, n_real=N)

    # 3) head merge + output projection as one full-width matmul      (B, Np, C)
    out = _out_projection(o, w_proj, b_proj, tile_m=tile_tok)

    return out if n_pad == N else out[:, :N, :]


# --------------------------------- reference -----------------------------------

def attention_reference(x, w_qkv, w_proj, b_proj, *, num_heads):
    """Pure-JAX reference mirroring the PyTorch math-mode forward."""
    B, N, C = x.shape
    D = C // num_heads
    scale = D ** (-0.5)
    qkv = jnp.einsum("bnc,cd->bnd", x, w_qkv)
    qkv = qkv.reshape(B, N, 3, num_heads, D)
    qkv = jnp.transpose(qkv, (2, 0, 3, 1, 4))
    q, k, v = qkv[0], qkv[1], qkv[2]
    attn = jnp.einsum("bhnd,bhmd->bhnm", q * scale, k)
    attn = jax.nn.softmax(attn, axis=-1)
    o = jnp.einsum("bhnm,bhmd->bhnd", attn, v)
    o = jnp.transpose(o, (0, 2, 1, 3)).reshape(B, N, C)
    return jnp.einsum("bnc,cd->bnd", o, w_proj) + b_proj[0]


if __name__ == "__main__":
    # Math attention mode, qkv_bias=False, rel_pos_spatial=False (COMPAT off).
    num_heads = 4
    key = jax.random.PRNGKey(0)

    # Case 1: B=2, H=W=4 -> N=16 tokens, C=32 channels (head_dim=8); N tiles cleanly.
    # Case 2: B=1, N=20 (non-dividing) -> exercises the padding + key-mask path.
    cases = [(2, 16, 32), (1, 20, 32)]
    for B, N, C in cases:
        key, kx, kqkv, kproj, kb = jax.random.split(key, 5)
        x = jax.random.normal(kx, (B, N, C), dtype=jnp.float32)
        w_qkv = jax.random.normal(kqkv, (C, 3 * C), dtype=jnp.float32) / (C ** 0.5)
        w_proj = jax.random.normal(kproj, (C, C), dtype=jnp.float32) / (C ** 0.5)
        b_proj = jax.random.normal(kb, (1, C), dtype=jnp.float32) * 0.01

        out = attention_forward(x, w_qkv, w_proj, b_proj, num_heads=num_heads)
        out = jax.block_until_ready(out)

        ref = attention_reference(x, w_qkv, w_proj, b_proj, num_heads=num_heads)
        assert out.shape == (B, N, C)
        assert jnp.max(jnp.abs(out - ref)) < 2e-3, "mismatch vs reference"

    print("KERNEL_OK")
</pallas_src>

<mosaic_0001>
module attributes {stable_mosaic.version = 11 : i64} {
  func.func @_qkv_split_kernel(%arg0: i32, %arg1: i32, %arg2: memref<1x16x32xf32, #tpu.memory_space<vmem>>, %arg3: memref<32x96xf32, #tpu.memory_space<vmem>>, %arg4: memref<1x4x16x8xf32, #tpu.memory_space<vmem>>, %arg5: memref<1x4x16x8xf32, #tpu.memory_space<vmem>>, %arg6: memref<1x4x16x8xf32, #tpu.memory_space<vmem>>) attributes {dimension_semantics = [#tpu.dimension_semantics<parallel>, #tpu.dimension_semantics<parallel>], iteration_bounds = array<i64: 2, 1>, scalar_prefetch = 0 : i64, scratch_operands = 0 : i64, tpu.core_type = #tpu.core_type<tc>, window_params = [{transform_indices = @transform_0, window_bounds = array<i64: 1, 16, 32>}, {pipeline_mode = #tpu.pipeline_mode<synchronous>, transform_indices = @transform_1, window_bounds = array<i64: 32, 96>}, {transform_indices = @transform_2, window_bounds = array<i64: 1, 4, 16, 8>}, {transform_indices = @transform_3, window_bounds = array<i64: 1, 4, 16, 8>}, {transform_indices = @transform_4, window_bounds = array<i64: 1, 4, 16, 8>}]} {
    %c0 = arith.constant 0 : index
    %c0_0 = arith.constant 0 : index
    %c0_1 = arith.constant 0 : index
    %0 = vector.load %arg2[%c0, %c0_0, %c0_1] : memref<1x16x32xf32, #tpu.memory_space<vmem>>, vector<1x16x32xf32>
    %1 = vector.shape_cast %0 : vector<1x16x32xf32> to vector<16x32xf32>
    %c0_2 = arith.constant 0 : index
    %c0_3 = arith.constant 0 : index
    %2 = vector.load %arg3[%c0_2, %c0_3] : memref<32x96xf32, #tpu.memory_space<vmem>>, vector<32x96xf32>
    %cst = arith.constant dense<0.000000e+00> : vector<16x96xf32>
    %3 = tpu.matmul %1, %2, %cst {dimension_numbers = #tpu.dot_dimension_numbers<[1], [0], [0], [1], [0, 0, 1, 1], [], []>} : vector<16x32xf32>, vector<32x96xf32>, vector<16x96xf32> -> vector<16x96xf32>
    %4 = vector.extract_strided_slice %3 {offsets = [0, 0], sizes = [16, 8], strides = [1, 1]} : vector<16x96xf32> to vector<16x8xf32>
    %c0_4 = arith.constant 0 : index
    %c0_5 = arith.constant 0 : index
    %c0_6 = arith.constant 0 : index
    %c0_7 = arith.constant 0 : index
    %5 = vector.load %arg4[%c0_4, %c0_5, %c0_6, %c0_7] : memref<1x4x16x8xf32, #tpu.memory_space<vmem>>, vector<1x1x16x8xf32>
    %6 = vector.shape_cast %5 : vector<1x1x16x8xf32> to vector<16x8xf32>
    %7 = vector.shape_cast %4 : vector<16x8xf32> to vector<1x1x16x8xf32>
    tpu.vector_store %arg4[%c0_4, %c0_5, %c0_6, %c0_7], %7 {strides = array<i32>} : memref<1x4x16x8xf32, #tpu.memory_space<vmem>>, vector<1x1x16x8xf32>,
    %8 = vector.extract_strided_slice %3 {offsets = [0, 8], sizes = [16, 8], strides = [1, 1]} : vector<16x96xf32> to vector<16x8xf32>
    %c0_8 = arith.constant 0 : index
    %c1 = arith.constant 1 : index
    %c0_9 = arith.constant 0 : index
    %c0_10 = arith.constant 0 : index
    %9 = vector.load %arg4[%c0_8, %c1, %c0_9, %c0_10] : memref<1x4x16x8xf32, #tpu.memory_space<vmem>>, vector<1x1x16x8xf32>
    %10 = vector.shape_cast %9 : vector<1x1x16x8xf32> to vector<16x8xf32>
    %11 = vector.shape_cast %8 : vector<16x8xf32> to vector<1x1x16x8xf32>
    tpu.vector_store %arg4[%c0_8, %c1, %c0_9, %c0_10], %11 {strides = array<i32>} : memref<1x4x16x8xf32, #tpu.memory_space<vmem>>, vector<1x1x16x8xf32>,
    %12 = vector.extract_strided_slice %3 {offsets = [0, 16], sizes = [16, 8], strides = [1, 1]} : vector<16x96xf32> to vector<16x8xf32>
    %c0_11 = arith.constant 0 : index
    %c2 = arith.constant 2 : index
    %c0_12 = arith.constant 0 : index
    %c0_13 = arith.constant 0 : index
    %13 = vector.load %arg4[%c0_11, %c2, %c0_12, %c0_13] : memref<1x4x16x8xf32, #tpu.memory_space<vmem>>, vector<1x1x16x8xf32>
    %14 = vector.shape_cast %13 : vector<1x1x16x8xf32> to vector<16x8xf32>
    %15 = vector.shape_cast %12 : vector<16x8xf32> to vector<1x1x16x8xf32>
    tpu.vector_store %arg4[%c0_11, %c2, %c0_12, %c0_13], %15 {strides = array<i32>} : memref<1x4x16x8xf32, #tpu.memory_space<vmem>>, vector<1x1x16x8xf32>,
    %16 = vector.extract_strided_slice %3 {offsets = [0, 24], sizes = [16, 8], strides = [1, 1]} : vector<16x96xf32> to vector<16x8xf32>
    %c0_14 = arith.constant 0 : index
    %c3 = arith.constant 3 : index
    %c0_15 = arith.constant 0 : index
    %c0_16 = arith.constant 0 : index
    %17 = vector.load %arg4[%c0_14, %c3, %c0_15, %c0_16] : memref<1x4x16x8xf32, #tpu.memory_space<vmem>>, vector<1x1x16x8xf32>
    %18 = vector.shape_cast %17 : vector<1x1x16x8xf32> to vector<16x8xf32>
    %19 = vector.shape_cast %16 : vector<16x8xf32> to vector<1x1x16x8xf32>
    tpu.vector_store %arg4[%c0_14, %c3, %c0_15, %c0_16], %19 {strides = array<i32>} : memref<1x4x16x8xf32, #tpu.memory_space<vmem>>, vector<1x1x16x8xf32>,
    %20 = vector.extract_strided_slice %3 {offsets = [0, 32], sizes = [16, 8], strides = [1, 1]} : vector<16x96xf32> to vector<16x8xf32>
    %c0_17 = arith.constant 0 : index
    %c0_18 = arith.constant 0 : index
    %c0_19 = arith.constant 0 : index
    %c0_20 = arith.constant 0 : index
    %21 = vector.load %arg5[%c0_17, %c0_18, %c0_19, %c0_20] : memref<1x4x16x8xf32, #tpu.memory_space<vmem>>, vector<1x1x16x8xf32>
    %22 = vector.shape_cast %21 : vector<1x1x16x8xf32> to vector<16x8xf32>
    %23 = vector.shape_cast %20 : vector<16x8xf32> to vector<1x1x16x8xf32>
    tpu.vector_store %arg5[%c0_17, %c0_18, %c0_19, %c0_20], %23 {strides = array<i32>} : memref<1x4x16x8xf32, #tpu.memory_space<vmem>>, vector<1x1x16x8xf32>,
    %24 = vector.extract_strided_slice %3 {offsets = [0, 40], sizes = [16, 8], strides = [1, 1]} : vector<16x96xf32> to vector<16x8xf32>
    %c0_21 = arith.constant 0 : index
    %c1_22 = arith.constant 1 : index
    %c0_23 = arith.constant 0 : index
    %c0_24 = arith.constant 0 : index
    %25 = vector.load %arg5[%c0_21, %c1_22, %c0_23, %c0_24] : memref<1x4x16x8xf32, #tpu.memory_space<vmem>>, vector<1x1x16x8xf32>
    %26 = vector.shape_cast %25 : vector<1x1x16x8xf32> to vector<16x8xf32>
    %27 = vector.shape_cast %24 : vector<16x8xf32> to vector<1x1x16x8xf32>
    tpu.vector_store %arg5[%c0_21, %c1_22, %c0_23, %c0_24], %27 {strides = array<i32>} : memref<1x4x16x8xf32, #tpu.memory_space<vmem>>, vector<1x1x16x8xf32>,
    %28 = vector.extract_strided_slice %3 {offsets = [0, 48], sizes = [16, 8], strides = [1, 1]} : vector<16x96xf32> to vector<16x8xf32>
    %c0_25 = arith.constant 0 : index
    %c2_26 = arith.constant 2 : index
    %c0_27 = arith.constant 0 : index
    %c0_28 = arith.constant 0 : index
    %29 = vector.load %arg5[%c0_25, %c2_26, %c0_27, %c0_28] : memref<1x4x16x8xf32, #tpu.memory_space<vmem>>, vector<1x1x16x8xf32>
    %30 = vector.shape_cast %29 : vector<1x1x16x8xf32> to vector<16x8xf32>
    %31 = vector.shape_cast %28 : vector<16x8xf32> to vector<1x1x16x8xf32>
    tpu.vector_store %arg5[%c0_25, %c2_26, %c0_27, %c0_28], %31 {strides = array<i32>} : memref<1x4x16x8xf32, #tpu.memory_space<vmem>>, vector<1x1x16x8xf32>,
    %32 = vector.extract_strided_slice %3 {offsets = [0, 56], sizes = [16, 8], strides = [1, 1]} : vector<16x96xf32> to vector<16x8xf32>
    %c0_29 = arith.constant 0 : index
    %c3_30 = arith.constant 3 : index
    %c0_31 = arith.constant 0 : index
    %c0_32 = arith.constant 0 : index
    %33 = vector.load %arg5[%c0_29, %c3_30, %c0_31, %c0_32] : memref<1x4x16x8xf32, #tpu.memory_space<vmem>>, vector<1x1x16x8xf32>
    %34 = vector.shape_cast %33 : vector<1x1x16x8xf32> to vector<16x8xf32>
    %35 = vector.shape_cast %32 : vector<16x8xf32> to vector<1x1x16x8xf32>
    tpu.vector_store %arg5[%c0_29, %c3_30, %c0_31, %c0_32], %35 {strides = array<i32>} : memref<1x4x16x8xf32, #tpu.memory_space<vmem>>, vector<1x1x16x8xf32>,
    %36 = vector.extract_strided_slice %3 {offsets = [0, 64], sizes = [16, 8], strides = [1, 1]} : vector<16x96xf32> to vector<16x8xf32>
    %c0_33 = arith.constant 0 : index
    %c0_34 = arith.constant 0 : index
    %c0_35 = arith.constant 0 : index
    %c0_36 = arith.constant 0 : index
    %37 = vector.load %arg6[%c0_33, %c0_34, %c0_35, %c0_36] : memref<1x4x16x8xf32, #tpu.memory_space<vmem>>, vector<1x1x16x8xf32>
    %38 = vector.shape_cast %37 : vector<1x1x16x8xf32> to vector<16x8xf32>
    %39 = vector.shape_cast %36 : vector<16x8xf32> to vector<1x1x16x8xf32>
    tpu.vector_store %arg6[%c0_33, %c0_34, %c0_35, %c0_36], %39 {strides = array<i32>} : memref<1x4x16x8xf32, #tpu.memory_space<vmem>>, vector<1x1x16x8xf32>,
    %40 = vector.extract_strided_slice %3 {offsets = [0, 72], sizes = [16, 8], strides = [1, 1]} : vector<16x96xf32> to vector<16x8xf32>
    %c0_37 = arith.constant 0 : index
    %c1_38 = arith.constant 1 : index
    %c0_39 = arith.constant 0 : index
    %c0_40 = arith.constant 0 : index
    %41 = vector.load %arg6[%c0_37, %c1_38, %c0_39, %c0_40] : memref<1x4x16x8xf32, #tpu.memory_space<vmem>>, vector<1x1x16x8xf32>
    %42 = vector.shape_cast %41 : vector<1x1x16x8xf32> to vector<16x8xf32>
    %43 = vector.shape_cast %40 : vector<16x8xf32> to vector<1x1x16x8xf32>
    tpu.vector_store %arg6[%c0_37, %c1_38, %c0_39, %c0_40], %43 {strides = array<i32>} : memref<1x4x16x8xf32, #tpu.memory_space<vmem>>, vector<1x1x16x8xf32>,
    %44 = vector.extract_strided_slice %3 {offsets = [0, 80], sizes = [16, 8], strides = [1, 1]} : vector<16x96xf32> to vector<16x8xf32>
    %c0_41 = arith.constant 0 : index
    %c2_42 = arith.constant 2 : index
    %c0_43 = arith.constant 0 : index
    %c0_44 = arith.constant 0 : index
    %45 = vector.load %arg6[%c0_41, %c2_42, %c0_43, %c0_44] : memref<1x4x16x8xf32, #tpu.memory_space<vmem>>, vector<1x1x16x8xf32>
    %46 = vector.shape_cast %45 : vector<1x1x16x8xf32> to vector<16x8xf32>
    %47 = vector.shape_cast %44 : vector<16x8xf32> to vector<1x1x16x8xf32>
    tpu.vector_store %arg6[%c0_41, %c2_42, %c0_43, %c0_44], %47 {strides = array<i32>} : memref<1x4x16x8xf32, #tpu.memory_space<vmem>>, vector<1x1x16x8xf32>,
    %48 = vector.extract_strided_slice %3 {offsets = [0, 88], sizes = [16, 8], strides = [1, 1]} : vector<16x96xf32> to vector<16x8xf32>
    %c0_45 = arith.constant 0 : index
    %c3_46 = arith.constant 3 : index
    %c0_47 = arith.constant 0 : index
    %c0_48 = arith.constant 0 : index
    %49 = vector.load %arg6[%c0_45, %c3_46, %c0_47, %c0_48] : memref<1x4x16x8xf32, #tpu.memory_space<vmem>>, vector<1x1x16x8xf32>
    %50 = vector.shape_cast %49 : vector<1x1x16x8xf32> to vector<16x8xf32>
    %51 = vector.shape_cast %48 : vector<16x8xf32> to vector<1x1x16x8xf32>
    tpu.vector_store %arg6[%c0_45, %c3_46, %c0_47, %c0_48], %51 {strides = array<i32>} : memref<1x4x16x8xf32, #tpu.memory_space<vmem>>, vector<1x1x16x8xf32>,
    return
  }
  func.func @transform_0(%arg0: i32, %arg1: i32) -> (i32, i32, i32) {
    %c0_i32 = arith.constant 0 : i32
    %c0_i32_0 = arith.constant 0 : i32
    return %arg0, %arg1, %c0_i32 : i32, i32, i32
  }
  func.func @transform_1(%arg0: i32, %arg1: i32) -> (i32, i32) {
    %c0_i32 = arith.constant 0 : i32
    %c0_i32_0 = arith.constant 0 : i32
    %c0_i32_1 = arith.constant 0 : i32
    return %c0_i32, %c0_i32_0 : i32, i32
  }
  func.func @transform_2(%arg0: i32, %arg1: i32) -> (i32, i32, i32, i32) {
    %c0_i32 = arith.constant 0 : i32
    %c0_i32_0 = arith.constant 0 : i32
    %c0_i32_1 = arith.constant 0 : i32
    return %arg0, %c0_i32, %arg1, %c0_i32_0 : i32, i32, i32, i32
  }
  func.func @transform_3(%arg0: i32, %arg1: i32) -> (i32, i32, i32, i32) {
    %c0_i32 = arith.constant 0 : i32
    %c0_i32_0 = arith.constant 0 : i32
    %c0_i32_1 = arith.constant 0 : i32
    return %arg0, %c0_i32, %arg1, %c0_i32_0 : i32, i32, i32, i32
  }
  func.func @transform_4(%arg0: i32, %arg1: i32) -> (i32, i32, i32, i32) {
    %c0_i32 = arith.constant 0 : i32
    %c0_i32_0 = arith.constant 0 : i32
    %c0_i32_1 = arith.constant 0 : i32
    return %arg0, %c0_i32, %arg1, %c0_i32_0 : i32, i32, i32, i32
  }
}

</mosaic_0001>

<llo_original>
// kernel: tpu_custom_call.1
$region0: #{tpu_custom_call.1}
  #allocation0 [shape = 'u32[]', space=smem, size = 0x4, offset = 0x4, fixed_abs, tag = 'smem constant byte address 0x4 - core index']
  #allocation1 [shape = 'u32[72,128]{1,0:T(1,128)}', space=vmem, size = 0x9000, scoped, tag = 'internal scratch']
  %s0 = inlined_call_operand.hbm [shape: f32[2,16,32], index: 0, kind: input, shape index: {}]
  %s1 = inlined_call_operand.hbm [shape: f32[32,96], index: 1, kind: input, shape index: {}]
  %s2 = inlined_call_operand.vmem [shape: f32[2,4,16,8], index: 2, kind: output, shape index: {0}]
  %s3 = inlined_call_operand.vmem [shape: f32[2,4,16,8], index: 3, kind: output, shape index: {1}]
  %s4 = inlined_call_operand.vmem [shape: f32[2,4,16,8], index: 4, kind: output, shape index: {2}]
  %5 = xla_tuple %s2, %s3, %s4
  %s6 = sld [smem:[#allocation0]]
  $region65: #{tpu_custom_call.1} parent=0
    _
  %s8 = ssub.s32 1, %s6
  %s9 = scalar_select 0, %s8, %s6
  $region1: #{tpu_custom_call.1} parent=0
    #allocation2 [shape = 'u8[16384]{0}', space=vmem, size = 0x4000, scoped, tag = 'input window, operand 0']
    #allocation3 [shape = 's32[2]{0}', space=sflag, size = 0x8, scoped, tag = 'scoped memory for tpu_custom_call.1']
    #allocation4 [shape = 'u8[16384]{0}', space=vmem, size = 0x4000, scoped, tag = 'input window, operand 1, single buffered']
    #allocation5 [shape = 's32[1]{0}', space=sflag, size = 0x4, scoped, tag = 'scoped memory for tpu_custom_call.1']
    %10 = vsyncpa [#allocation3], 0
    %s11 = scalar_lea.sflag [#allocation3], 1
    %12 = vsyncpa %s11, 0
    %13 = vsyncpa [#allocation5], 0
    loop: start=0, step=1, limit=4
    $region2: #{tpu_custom_call.1} parent=1 // loop_pre_header
      _
    $region3: #{tpu_custom_call.1} parent=1 // loop_header
      %s15 = sphi 0, %s19
      %p16 = scmp.ge.s32.totalorder %s15, 4
      %s22 = sphi 0, %s34
      %s23 = sphi 0, %s30
      %s24 = sphi 0, %s22
      %s25 = sphi 0, %s23
      %s26 = sphi 0, %s24
      %s27 = sphi 0, %s25
      %s39 = sphi 0, %s41
      %s42 = sphi 0, %s39
      %s43 = sphi 0, %s42
      %s59 = sphi 0, %s43
      %s63 = sphi 0, %s63
      %s65 = sphi 0, %s63
      %s66 = sphi 0, %s65
      %s80 = sphi 0, %s66
      %s88 = sphi 0, %s90
      %s91 = sphi 0, %s88
      %s92 = sphi 0, %s91
      %s108 = sphi 0, %s92
      %s116 = sphi 0, %s118
      %s119 = sphi 0, %s116
      %s120 = sphi 0, %s119
      %s136 = sphi 0, %s120
      %s144 = sphi 0, %s146
      %s147 = sphi 0, %s144
      %s148 = sphi 0, %s147
      %s164 = sphi 0, %s148
    $region4: #{tpu_custom_call.1} parent=1 // loop_header_branch
      %18 = sbr.rel (%p16) target = $region8
    $region5: #{tpu_custom_call.1} parent=1 // loop_body
      %s20 = ssub.s32 %s15, 1
      %s21 = ssub.s32 %s15, 2
      %s28 = sadd.s32 1, %s23
      %p29 = scmp.ge.s32.totalorder %s28, 1
      %s30 = scalar_select %p29, 0, %s28
      %s31 = sadd.s32 1, %s22
      %s32 = scalar_select %p29, %s31, %s22
      %p33 = scmp.ge.s32.totalorder %s32, 2
      %s34 = scalar_select %p33, 0, %s32
      %s35 = ssub.s32 %s22, %s34
      %s36 = ssub.s32 %s23, %s30
      %s37 = sor.u32 %s35, %s36
      %p38 = scmp.eq.s32.totalorder %s37, 0
      %s40 = sadd.s32 %s39, 1
      %s41 = scalar_select %p38, %s39, %s40
      %p44 = pneg %p38
      %p45 = scmp.eq.s32.totalorder %s15, 1
      %p46 = por %p44, %p45
      %p47 = scmp.ne.s32.totalorder %s39, %s42
      %p48 = scmp.eq.s32.totalorder %s15, 0
      %p49 = por %p47, %p48
      %p50 = scmp.ne.s32.totalorder %s39, %s42
      %p51 = scmp.eq.s32.totalorder %s20, 1
      %p52 = por %p50, %p51
      %p53 = scmp.ne.s32.totalorder %s42, %s43
      %p54 = scmp.eq.s32.totalorder %s20, 0
      %p55 = por %p53, %p54
      %p56 = scmp.ne.s32.totalorder %s42, %s43
      %p57 = scmp.eq.s32.totalorder %s21, 1
      %p58 = por %p56, %p57
      %p60 = scmp.ne.s32.totalorder %s43, %s59
      %p61 = scmp.eq.s32.totalorder %s21, 0
      %p62 = por %p60, %p61
      %s64 = sadd.s32 %s63, 1
      %p67 = scmp.eq.s32.totalorder %s15, 1
      %p68 = scmp.ne.s32.totalorder %s63, %s65
      %p69 = scmp.eq.s32.totalorder %s15, 0
      %p70 = por %p68, %p69
      %p71 = scmp.ne.s32.totalorder %s63, %s65
      %p72 = scmp.eq.s32.totalorder %s20, 1
      %p73 = por %p71, %p72
      %p74 = scmp.ne.s32.totalorder %s65, %s66
      %p75 = scmp.eq.s32.totalorder %s20, 0
      %p76 = por %p74, %p75
      %p77 = scmp.ne.s32.totalorder %s65, %s66
      %p78 = scmp.eq.s32.totalorder %s21, 1
      %p79 = por %p77, %p78
      %p81 = scmp.ne.s32.totalorder %s66, %s80
      %p82 = scmp.eq.s32.totalorder %s21, 0
      %p83 = por %p81, %p82
      %s84 = ssub.s32 %s22, %s34
      %s85 = ssub.s32 %s23, %s30
      %s86 = sor.u32 %s84, %s85
      %p87 = scmp.eq.s32.totalorder %s86, 0
      %s89 = sadd.s32 %s88, 1
      %s90 = scalar_select %p87, %s88, %s89
      %p93 = pneg %p87
      %p94 = scmp.eq.s32.totalorder %s15, 1
      %p95 = por %p93, %p94
      %p96 = scmp.ne.s32.totalorder %s88, %s91
      %p97 = scmp.eq.s32.totalorder %s15, 0
      %p98 = por %p96, %p97
      %p99 = scmp.ne.s32.totalorder %s88, %s91
      %p100 = scmp.eq.s32.totalorder %s20, 1
      %p101 = por %p99, %p100
      %p102 = scmp.ne.s32.totalorder %s91, %s92
      %p103 = scmp.eq.s32.totalorder %s20, 0
      %p104 = por %p102, %p103
      %p105 = scmp.ne.s32.totalorder %s91, %s92
      %p106 = scmp.eq.s32.totalorder %s21, 1
      %p107 = por %p105, %p106
      %p109 = scmp.ne.s32.totalorder %s92, %s108
      %p110 = scmp.eq.s32.totalorder %s21, 0
      %p111 = por %p109, %p110
      %s112 = ssub.s32 %s22, %s34
      %s113 = ssub.s32 %s23, %s30
      %s114 = sor.u32 %s112, %s113
      %p115 = scmp.eq.s32.totalorder %s114, 0
      %s117 = sadd.s32 %s116, 1
      %s118 = scalar_select %p115, %s116, %s117
      %p121 = pneg %p115
      %p122 = scmp.eq.s32.totalorder %s15, 1
      %p123 = por %p121, %p122
      %p124 = scmp.ne.s32.totalorder %s116, %s119
      %p125 = scmp.eq.s32.totalorder %s15, 0
      %p126 = por %p124, %p125
      %p127 = scmp.ne.s32.totalorder %s116, %s119
      %p128 = scmp.eq.s32.totalorder %s20, 1
      %p129 = por %p127, %p128
      %p130 = scmp.ne.s32.totalorder %s119, %s120
      %p131 = scmp.eq.s32.totalorder %s20, 0
      %p132 = por %p130, %p131
      %p133 = scmp.ne.s32.totalorder %s119, %s120
      %p134 = scmp.eq.s32.totalorder %s21, 1
      %p135 = por %p133, %p134
      %p137 = scmp.ne.s32.totalorder %s120, %s136
      %p138 = scmp.eq.s32.totalorder %s21, 0
      %p139 = por %p137, %p138
      %s140 = ssub.s32 %s22, %s34
      %s141 = ssub.s32 %s23, %s30
      %s142 = sor.u32 %s140, %s141
      %p143 = scmp.eq.s32.totalorder %s142, 0
      %s145 = sadd.s32 %s144, 1
      %s146 = scalar_select %p143, %s144, %s145
      %p149 = pneg %p143
      %p150 = scmp.eq.s32.totalorder %s15, 1
      %p151 = por %p149, %p150
      %p152 = scmp.ne.s32.totalorder %s144, %s147
      %p153 = scmp.eq.s32.totalorder %s15, 0
      %p154 = por %p152, %p153
      %p155 = scmp.ne.s32.totalorder %s144, %s147
      %p156 = scmp.eq.s32.totalorder %s20, 1
      %p157 = por %p155, %p156
      %p158 = scmp.ne.s32.totalorder %s147, %s148
      %p159 = scmp.eq.s32.totalorder %s20, 0
      %p160 = por %p158, %p159
      %p161 = scmp.ne.s32.totalorder %s147, %s148
      %p162 = scmp.eq.s32.totalorder %s21, 1
      %p163 = por %p161, %p162
      %p165 = scmp.ne.s32.totalorder %s148, %s164
      %p166 = scmp.eq.s32.totalorder %s21, 0
      %p167 = por %p165, %p166
      %p168 = scmp.le.s32.totalorder 1, %s15
      %p169 = scmp.lt.s32.totalorder %s15, 3
      %p170 = pnand %p168, %p169
      %p171 = pneg %p170
      // Predicated region
      $region9: #{tpu_custom_call.1} parent=5 // pred_check
        _
      $region10: #{tpu_custom_call.1} parent=5 // pred_check_branch
        %173 = sbr.rel (%p170) target = $region12
      $region11: #{tpu_custom_call.1} parent=5 // pred_region
        %s174 = ssub.s32 %s15, 1
        // Predicated region
        $region13: #{tpu_custom_call.1} parent=11 // pred_check
          %p175 = pneg %p76
        $region14: #{tpu_custom_call.1} parent=11 // pred_check_branch
          %177 = sbr.rel (%p175) target = $region16
        $region15: #{tpu_custom_call.1} parent=11 // pred_region
          %179 = vsyncadd [#allocation5], 0
          %s180 = sshll.u32 %s1, 4
          %s181 = int_to_ptr.hbm [resolvable:$true] %s180
          %s182 = sshll.u32 [#allocation4], 4
          %s183 = int_to_ptr.vmem [resolvable:$true] %s182
          %188 = dma.hbm_to_vmem [thread:$0]  %s181, 512, %s183, [#allocation5], 128, 128, 8
        $region16: #{tpu_custom_call.1} parent=11 // pred_fallthru
          _
      $region12: #{tpu_custom_call.1} parent=5 // pred_fallthru
        _
      %p189 = scmp.lt.s32.totalorder %s15, 2
      // Predicated region
      $region17: #{tpu_custom_call.1} parent=5 // pred_check
        %p190 = pneg %p189
      $region18: #{tpu_custom_call.1} parent=5 // pred_check_branch
        %192 = sbr.rel (%p190) target = $region20
      $region19: #{tpu_custom_call.1} parent=5 // pred_region
        // Predicated region
        $region21: #{tpu_custom_call.1} parent=19 // pred_check
          %p193 = pneg %p49
        $region22: #{tpu_custom_call.1} parent=19 // pred_check_branch
          %195 = sbr.rel (%p193) target = $region24
        $region23: #{tpu_custom_call.1} parent=19 // pred_region
          %s196 = sand.u32 %s39, 1
          %s197 = scalar_lea.sflag [#allocation3], %s196
          %s198 = sand.u32 %s39, 1
          %s199 = smul.addr %s198, 16
          %s200 = scalar_lea.vmem [#allocation2], %s199
          %s201 = smul.u32 2, %s23
          %203 = vsyncadd %s197, 0
          %s204 = smul.addr %s22, 2
          %s205 = sadd.s32 %s201, %s204
          %s206 = smul.addr %s205, 8
          %s207 = scalar_lea.hbm %s0, %s206
          %s208 = sshll.u32 %s207, 4
          %s209 = int_to_ptr.hbm [resolvable:$true] %s208
          %s210 = sshll.u32 %s200, 4
          %s211 = int_to_ptr.vmem [resolvable:$true] %s210
          %216 = dma.hbm_to_vmem [thread:$0]  %s209, 256, %s211, %s197, 128, 128, 8
        $region24: #{tpu_custom_call.1} parent=19 // pred_fallthru
          _
      $region20: #{tpu_custom_call.1} parent=5 // pred_fallthru
        _
      %p217 = scmp.le.s32.totalorder 1, %s15
      %p218 = scmp.lt.s32.totalorder %s15, 3
      %p219 = pnand %p217, %p218
      %p220 = pneg %p219
      // Predicated region
      $region25: #{tpu_custom_call.1} parent=5 // pred_check
        _
      $region26: #{tpu_custom_call.1} parent=5 // pred_check_branch
        %222 = sbr.rel (%p219) target = $region28
      $region27: #{tpu_custom_call.1} parent=5 // pred_region
        %s223 = ssub.s32 %s15, 1
        %s224 = sand.u32 %s42, 1
        %s225 = scalar_lea.sflag [#allocation3], %s224
        %s226 = sand.u32 %s42, 1
        %s227 = smul.addr %s226, 16
        %s228 = scalar_lea.vmem [#allocation2], %s227
        // Predicated region
        $region29: #{tpu_custom_call.1} parent=27 // pred_check
          %p229 = pneg %p55
        $region30: #{tpu_custom_call.1} parent=27 // pred_check_branch
          %231 = sbr.rel (%p229) target = $region32
        $region31: #{tpu_custom_call.1} parent=27 // pred_region
          %233 = dma.done %s225, 256
        $region32: #{tpu_custom_call.1} parent=27 // pred_fallthru
          _
        // Predicated region
        $region33: #{tpu_custom_call.1} parent=27 // pred_check
          %p234 = pneg %p76
        $region34: #{tpu_custom_call.1} parent=27 // pred_check_branch
          %236 = sbr.rel (%p234) target = $region36
        $region35: #{tpu_custom_call.1} parent=27 // pred_region
          %238 = dma.done [#allocation5], 512
        $region36: #{tpu_custom_call.1} parent=27 // pred_fallthru
          _
        %s239 = sand.u32 %s42, 1
        %s240 = scalar_lea.sflag [#allocation3], %s239
        %s241 = sand.u32 %s42, 1
        %s242 = smul.addr %s241, 16
        %s243 = scalar_lea.vmem [#allocation2], %s242
        %p244 = pneg %p55
        %p245 = pneg %p52
        %p246 = pneg %p76
        %p247 = pneg %p73
        %p248 = pneg %p104
        %p249 = pneg %p101
        %s250 = smul.u32 2, %s25
        %p251 = scmp.lt.s32.totalorder %s24, 1
        %s252 = scalar_select %p251, %s24, 1
        %p253 = scmp.lt.s32.totalorder %s250, 1
        %s254 = scalar_select %p253, %s250, 1
        %s255 = smul.addr %s252, 8
        %s256 = sadd.s32 %s254, %s255
        %s257 = smul.addr %s256, 8
        %s258 = scalar_lea.vmem %s2, %s257
        %p259 = pneg %p132
        %p260 = pneg %p129
        %s261 = smul.u32 2, %s25
        %p262 = scmp.lt.s32.totalorder %s24, 1
        %s263 = scalar_select %p262, %s24, 1
        %p264 = scmp.lt.s32.totalorder %s261, 1
        %s265 = scalar_select %p264, %s261, 1
        %s266 = smul.addr %s263, 8
        %s267 = sadd.s32 %s265, %s266
        %s268 = smul.addr %s267, 8
        %s269 = scalar_lea.vmem %s3, %s268
        %p270 = pneg %p160
        %p271 = pneg %p157
        %s272 = smul.u32 2, %s25
        %p273 = scmp.lt.s32.totalorder %s24, 1
        %s274 = scalar_select %p273, %s24, 1
        %p275 = scmp.lt.s32.totalorder %s272, 1
        %s276 = scalar_select %p275, %s272, 1
        %s277 = smul.addr %s274, 8
        %s278 = sadd.s32 %s276, %s277
        %s279 = smul.addr %s278, 8
        %s280 = scalar_lea.vmem %s4, %s279
        %s281 = smul.u32 2, %s25
        %s282 = smul.u32 2, %s25
        %p283 = scmp.lt.s32.totalorder %s24, 1
        %s284 = scalar_select %p283, %s24, 1
        %p285 = scmp.lt.s32.totalorder %s282, 1
        %s286 = scalar_select %p285, %s282, 1
        %s287 = smul.addr %s284, 8
        %s288 = sadd.s32 %s286, %s287
        %s289 = smul.addr %s288, 8
        %s290 = scalar_lea.vmem %s2, %s289
        %s291 = smul.u32 2, %s25
        %s292 = smul.u32 2, %s25
        %p293 = scmp.lt.s32.totalorder %s24, 1
        %s294 = scalar_select %p293, %s24, 1
        %p295 = scmp.lt.s32.totalorder %s292, 1
        %s296 = scalar_select %p295, %s292, 1
        %s297 = smul.addr %s294, 8
        %s298 = sadd.s32 %s296, %s297
        %s299 = smul.addr %s298, 8
        %s300 = scalar_lea.vmem %s3, %s299
        %s301 = smul.u32 2, %s25
        %s302 = smul.u32 2, %s25
        %p303 = scmp.lt.s32.totalorder %s24, 1
        %s304 = scalar_select %p303, %s24, 1
        %p305 = scmp.lt.s32.totalorder %s302, 1
        %s306 = scalar_select %p305, %s302, 1
        %s307 = smul.addr %s304, 8
        %s308 = sadd.s32 %s306, %s307
        %s309 = smul.addr %s308, 8
        %s310 = scalar_lea.vmem %s4, %s309
        %s311 = smul.u32 2, %s25
        %v312 = vld [vmem:[%s228] sm:$0xff]
        %v313 = vld [vmem:[%s228 + $0x8] sm:$0xff]
        %v314 = vld [vmem:[#allocation4] sm:$0xff]
        %v315 = vld [vmem:[#allocation4 + $0x8] sm:$0xff]
        %v316 = vld [vmem:[#allocation4 + $0x10] sm:$0xff]
        %v317 = vld [vmem:[#allocation4 + $0x18] sm:$0xff]
        %vm318 = vcmask 261120
        %v320 = vsel %vm318, %v312, 0
        %v323 = vsel %vm318, %v313, 0
        %325 = vmatpush.msra.mxu0 0.0
        %326 = vmatpush.msra.mxu0 0.0
        %327 = vmatpush.msra.mxu0 0.0
        %328 = vmatpush.msra.mxu0 0.0
        %329 = vmatpush.msra.mxu0 0.0
        %330 = vmatpush.msra.mxu0 0.0
        %331 = vmatpush.msra.mxu0 0.0
        %332 = vmatpush.msra.mxu0 0.0
        %333 = vmatpush.msra.mxu0 0.0
        %334 = vmatpush.msra.mxu0 0.0
        %335 = vmatpush.msra.mxu0 0.0
        %336 = vmatpush.msra.mxu0 0.0
        %337 = vmatpush.msra.mxu0 %v317
        %338 = vmatpush.msra.mxu0 %v316
        %339 = vmatpush.msra.mxu0 %v315
        %340 = vmatpush.msra.mxu0 %v314
        %341 = vmatmul.f32.gmra.mxu0 %v320
        %v342 = vpop.f32.mrf.mxu0
        %v343 = vadd.f32 0.0, %v342
        %344 = vmatmul.f32.gmra.mxu0 %v323
        %v345 = vpop.f32.mrf.mxu0
        %v346 = vadd.f32 0.0, %v345
        %347 = vdwg.mxu0
        %vm348 = vcmask 64512
        %349 = vst.msk [vmem:[%s290] sm:$0xff] %vm348, %v343
        %350 = vst.msk [vmem:[%s290 + $0x8] sm:$0xff] %vm348, %v346
        %353 = vrot.lane.b32.xlu0 %v343, 120
        %v354 = vpop.permute.xlu0 %353
        %355 = vrot.lane.b32.xlu0 %v346, 120
        %v356 = vpop.permute.xlu0 %355
        %s359 = scalar_lea.vmem %s290, 16
        %360 = vst.msk [vmem:[%s359] sm:$0xff] %vm348, %v354
        %361 = vst.msk [vmem:[%s359 + $0x8] sm:$0xff] %vm348, %v356
        %362 = vrot.lane.b32.xlu0 %v343, 112
        %v363 = vpop.permute.xlu0 %362
        %364 = vrot.lane.b32.xlu0 %v346, 112
        %v365 = vpop.permute.xlu0 %364
        %s368 = scalar_lea.vmem %s290, 32
        %369 = vst.msk [vmem:[%s368] sm:$0xff] %vm348, %v363
        %370 = vst.msk [vmem:[%s368 + $0x8] sm:$0xff] %vm348, %v365
        %371 = vrot.lane.b32.xlu0 %v343, 104
        %v372 = vpop.permute.xlu0 %371
        %373 = vrot.lane.b32.xlu0 %v346, 104
        %v374 = vpop.permute.xlu0 %373
        %s377 = scalar_lea.vmem %s290, 48
        %378 = vst.msk [vmem:[%s377] sm:$0xff] %vm348, %v372
        %379 = vst.msk [vmem:[%s377 + $0x8] sm:$0xff] %vm348, %v374
        %380 = vrot.lane.b32.xlu0 %v343, 96
        %v381 = vpop.permute.xlu0 %380
        %382 = vrot.lane.b32.xlu0 %v346, 96
        %v383 = vpop.permute.xlu0 %382
        %386 = vst.msk [vmem:[%s300] sm:$0xff] %vm348, %v381
        %387 = vst.msk [vmem:[%s300 + $0x8] sm:$0xff] %vm348, %v383
        %388 = vrot.lane.b32.xlu0 %v343, 88
        %v389 = vpop.permute.xlu0 %388
        %390 = vrot.lane.b32.xlu0 %v346, 88
        %v391 = vpop.permute.xlu0 %390
        %s394 = scalar_lea.vmem %s300, 16
        %395 = vst.msk [vmem:[%s394] sm:$0xff] %vm348, %v389
        %396 = vst.msk [vmem:[%s394 + $0x8] sm:$0xff] %vm348, %v391
        %397 = vrot.lane.b32.xlu0 %v343, 80
        %v398 = vpop.permute.xlu0 %397
        %399 = vrot.lane.b32.xlu0 %v346, 80
        %v400 = vpop.permute.xlu0 %399
        %s403 = scalar_lea.vmem %s300, 32
        %404 = vst.msk [vmem:[%s403] sm:$0xff] %vm348, %v398
        %405 = vst.msk [vmem:[%s403 + $0x8] sm:$0xff] %vm348, %v400
        %406 = vrot.lane.b32.xlu0 %v343, 72
        %v407 = vpop.permute.xlu0 %406
        %408 = vrot.lane.b32.xlu0 %v346, 72
        %v409 = vpop.permute.xlu0 %408
        %s412 = scalar_lea.vmem %s300, 48
        %413 = vst.msk [vmem:[%s412] sm:$0xff] %vm348, %v407
        %414 = vst.msk [vmem:[%s412 + $0x8] sm:$0xff] %vm348, %v409
        %415 = vrot.lane.b32.xlu0 %v343, 64
        %v416 = vpop.permute.xlu0 %415
        %417 = vrot.lane.b32.xlu0 %v346, 64
        %v418 = vpop.permute.xlu0 %417
        %421 = vst.msk [vmem:[%s310] sm:$0xff] %vm348, %v416
        %422 = vst.msk [vmem:[%s310 + $0x8] sm:$0xff] %vm348, %v418
        %423 = vrot.lane.b32.xlu0 %v343, 56
        %v424 = vpop.permute.xlu0 %423
        %425 = vrot.lane.b32.xlu0 %v346, 56
        %v426 = vpop.permute.xlu0 %425
        %s429 = scalar_lea.vmem %s310, 16
        %430 = vst.msk [vmem:[%s429] sm:$0xff] %vm348, %v424
        %431 = vst.msk [vmem:[%s429 + $0x8] sm:$0xff] %vm348, %v426
        %432 = vrot.lane.b32.xlu0 %v343, 48
        %v433 = vpop.permute.xlu0 %432
        %434 = vrot.lane.b32.xlu0 %v346, 48
        %v435 = vpop.permute.xlu0 %434
        %s438 = scalar_lea.vmem %s310, 32
        %439 = vst.msk [vmem:[%s438] sm:$0xff] %vm348, %v433
        %440 = vst.msk [vmem:[%s438 + $0x8] sm:$0xff] %vm348, %v435
        %441 = vrot.lane.b32.xlu0 %v343, 40
        %v442 = vpop.permute.xlu0 %441
        %443 = vrot.lane.b32.xlu0 %v346, 40
        %v444 = vpop.permute.xlu0 %443
        %s447 = scalar_lea.vmem %s310, 48
        %448 = vst.msk [vmem:[%s447] sm:$0xff] %vm348, %v442
        %449 = vst.msk [vmem:[%s447 + $0x8] sm:$0xff] %vm348, %v444
        %s450 = smul.u32 2, %s25
        %p451 = scmp.lt.s32.totalorder %s24, 1
        %s452 = scalar_select %p451, %s24, 1
        %p453 = scmp.lt.s32.totalorder %s450, 1
        %s454 = scalar_select %p453, %s450, 1
        %s455 = smul.addr %s452, 8
        %s456 = sadd.s32 %s454, %s455
        %s457 = smul.addr %s456, 8
        %s458 = scalar_lea.vmem %s2, %s457
        %s459 = smul.u32 2, %s25
        %p460 = scmp.lt.s32.totalorder %s24, 1
        %s461 = scalar_select %p460, %s24, 1
        %p462 = scmp.lt.s32.totalorder %s459, 1
        %s463 = scalar_select %p462, %s459, 1
        %s464 = smul.addr %s461, 8
        %s465 = sadd.s32 %s463, %s464
        %s466 = smul.addr %s465, 8
        %s467 = scalar_lea.vmem %s3, %s466
        %s468 = smul.u32 2, %s25
        %p469 = scmp.lt.s32.totalorder %s24, 1
        %s470 = scalar_select %p469, %s24, 1
        %p471 = scmp.lt.s32.totalorder %s468, 1
        %s472 = scalar_select %p471, %s468, 1
        %s473 = smul.addr %s470, 8
        %s474 = sadd.s32 %s472, %s473
        %s475 = smul.addr %s474, 8
        %s476 = scalar_lea.vmem %s4, %s475
        // Predicated region
        $region37: #{tpu_custom_call.1} parent=27 // pred_check
          %p477 = pneg %p101
        $region38: #{tpu_custom_call.1} parent=27 // pred_check_branch
          %479 = sbr.rel (%p477) target = $region40
        $region39: #{tpu_custom_call.1} parent=27 // pred_region
          %s480 = smul.u32 2, %s25
        $region40: #{tpu_custom_call.1} parent=27 // pred_fallthru
          _
        // Predicated region
        $region41: #{tpu_custom_call.1} parent=27 // pred_check
          %p481 = pneg %p129
        $region42: #{tpu_custom_call.1} parent=27 // pred_check_branch
          %483 = sbr.rel (%p481) target = $region44
        $region43: #{tpu_custom_call.1} parent=27 // pred_region
          %s484 = smul.u32 2, %s25
        $region44: #{tpu_custom_call.1} parent=27 // pred_fallthru
          _
        // Predicated region
        $region45: #{tpu_custom_call.1} parent=27 // pred_check
          %p485 = pneg %p157
        $region46: #{tpu_custom_call.1} parent=27 // pred_check_branch
          %487 = sbr.rel (%p485) target = $region48
        $region47: #{tpu_custom_call.1} parent=27 // pred_region
          %s488 = smul.u32 2, %s25
        $region48: #{tpu_custom_call.1} parent=27 // pred_fallthru
          _
      $region28: #{tpu_custom_call.1} parent=5 // pred_fallthru
        _
      %p489 = scmp.le.s32.totalorder 2, %s15
      // Predicated region
      $region49: #{tpu_custom_call.1} parent=5 // pred_check
        %p490 = pneg %p489
      $region50: #{tpu_custom_call.1} parent=5 // pred_check_branch
        %492 = sbr.rel (%p490) target = $region52
      $region51: #{tpu_custom_call.1} parent=5 // pred_region
        %s493 = ssub.s32 %s15, 2
        // Predicated region
        $region53: #{tpu_custom_call.1} parent=51 // pred_check
          %p494 = pneg %p107
        $region54: #{tpu_custom_call.1} parent=51 // pred_check_branch
          %496 = sbr.rel (%p494) target = $region56
        $region55: #{tpu_custom_call.1} parent=51 // pred_region
          %s497 = smul.u32 2, %s27
          %p498 = scmp.lt.s32.totalorder %s26, 1
          %s499 = scalar_select %p498, %s26, 1
          %p500 = scmp.lt.s32.totalorder %s497, 1
          %s501 = scalar_select %p500, %s497, 1
          %s502 = smul.addr %s499, 8
          %s503 = sadd.s32 %s501, %s502
          %s504 = smul.addr %s503, 8
          %s505 = scalar_lea.vmem %s2, %s504
        $region56: #{tpu_custom_call.1} parent=51 // pred_fallthru
          _
        // Predicated region
        $region57: #{tpu_custom_call.1} parent=51 // pred_check
          %p506 = pneg %p135
        $region58: #{tpu_custom_call.1} parent=51 // pred_check_branch
          %508 = sbr.rel (%p506) target = $region60
        $region59: #{tpu_custom_call.1} parent=51 // pred_region
          %s509 = smul.u32 2, %s27
          %p510 = scmp.lt.s32.totalorder %s26, 1
          %s511 = scalar_select %p510, %s26, 1
          %p512 = scmp.lt.s32.totalorder %s509, 1
          %s513 = scalar_select %p512, %s509, 1
          %s514 = smul.addr %s511, 8
          %s515 = sadd.s32 %s513, %s514
          %s516 = smul.addr %s515, 8
          %s517 = scalar_lea.vmem %s3, %s516
        $region60: #{tpu_custom_call.1} parent=51 // pred_fallthru
          _
        // Predicated region
        $region61: #{tpu_custom_call.1} parent=51 // pred_check
          %p518 = pneg %p163
        $region62: #{tpu_custom_call.1} parent=51 // pred_check_branch
          %520 = sbr.rel (%p518) target = $region64
        $region63: #{tpu_custom_call.1} parent=51 // pred_region
          %s521 = smul.u32 2, %s27
          %p522 = scmp.lt.s32.totalorder %s26, 1
          %s523 = scalar_select %p522, %s26, 1
          %p524 = scmp.lt.s32.totalorder %s521, 1
          %s525 = scalar_select %p524, %s521, 1
          %s526 = smul.addr %s523, 8
          %s527 = sadd.s32 %s525, %s526
          %s528 = smul.addr %s527, 8
          %s529 = scalar_lea.vmem %s4, %s528
        $region64: #{tpu_custom_call.1} parent=51 // pred_fallthru
          _
      $region52: #{tpu_custom_call.1} parent=5 // pred_fallthru
        _
    $region6: #{tpu_custom_call.1} parent=1 // loop_footer
      %s19 = sadd.s32 1, %s15
    $region7: #{tpu_custom_call.1} parent=1 // loop_footer_branch
      %14 = sbr.rel target = $region3
    $region8: #{tpu_custom_call.1} parent=1 // loop_exit
      _
    %530 = vsyncpa [#allocation3], 1
    %s531 = scalar_lea.sflag [#allocation3], 1
    %532 = vsyncpa %s531, 1
    %533 = vsyncpa [#allocation5], 1

</llo_original>
